<compile_context>
chip_gen: v6e
topology: v6e:2x2x1
jax: 0.10.0
libtpu: 0.0.40
codegen_flags: <defaults>
</compile_context>

<pallas_src>
import jax
import jax.numpy as jnp
from jax.experimental import pallas as pl
from jax.experimental.pallas import tpu as pltpu

_LANE = 128
# ~half of v5e's 16 MiB scoped-VMEM default; v6e/v7x defaults are larger.
_VMEM_SINGLE_BLOCK_BUDGET = 8 * 1024 * 1024
_MAX_BATCH_TILE = 4096


def _round_up(n, m):
    return ((n + m - 1) // m) * m


def _mlp_kernel(x_ref, w1_ref, b1_ref, w2_ref, b2_ref, o_ref):
    out_dim = o_ref.shape[-1]
    # fc_1 on the MXU: bf16 operands, f32 accumulate.  K = in_dim is tiny so
    # this matmul is essentially free filler; not worth further optimization.
    h = jnp.dot(x_ref[...].astype(jnp.bfloat16), w1_ref[...],
                preferred_element_type=jnp.float32)
    # dropout (eval mode) -> identity; bias + ReLU in f32 (v5e VPU has no bf16).
    h = jnp.maximum(h + b1_ref[...], 0.0)
    # fc_2: lane-dense [B, H] @ [H, out_pad] on the MXU ...
    out = jnp.dot(h.astype(jnp.bfloat16), w2_ref[...],
                  preferred_element_type=jnp.float32)
    # ... but store only the true out_dim columns.  The handful of masked vst's
    # are nowhere near saturating the store slot, and this avoids a 64x padded
    # HBM writeback plus a wrapper-side slice op.
    o_ref[...] = (out[:, :out_dim] + b2_ref[...]).astype(o_ref.dtype)


def prepare_mlp_params(w1, b1, w2, b2):
    """One-time parameter prep (call at init, NOT per forward):
       * matmul weights cast to bf16 (MXU-native operands),
       * w2's output axis zero-padded to a lane-dense multiple of 128,
       * biases kept f32 and 2-D for a clean (sublane, lane) layout."""
    out_dim = w2.shape[1]
    out_pad = _round_up(out_dim, _LANE)
    if out_pad != out_dim:
        w2 = jnp.pad(w2, ((0, 0), (0, out_pad - out_dim)))
    return (w1.astype(jnp.bfloat16),
            jnp.asarray(b1, jnp.float32).reshape(1, -1),
            w2.astype(jnp.bfloat16),
            jnp.asarray(b2, jnp.float32).reshape(1, -1))


def _pick_batch_tile(batch, rows_budget):
    """None -> single un-gridded VMEM block.  Otherwise a batch-tile size that
    is a multiple of 256, gives >= 2 grid steps, and (for small grids, where it
    matters) an even grid length so v7x's two TensorCores get equal work."""
    if batch <= rows_budget:
        return None
    tb = min(_MAX_BATCH_TILE, _round_up(pl.cdiv(batch, 2), 256))
    n = pl.cdiv(batch, tb)
    # Even grid length for v7x's 2 TCs.  For n <= 16 this adjustment is
    # guaranteed to land on an even grid; for huge grids a single-step
    # imbalance is negligible so we skip it.
    if n % 2 and n <= 16:
        tb = _round_up(pl.cdiv(batch, n + 1), 256)
    return tb


def mlp_forward(x, params):
    """Fused MLP forward.  x: [B, in_dim]; params from prepare_mlp_params()."""
    w1, b1, w2p, b2 = params
    batch, in_dim = x.shape
    hidden = w1.shape[1]
    out_pad = w2p.shape[1]
    out_dim = b2.shape[1]

    flops = 2 * batch * (in_dim * hidden + hidden * out_pad)
    bytes_accessed = (x.size * x.dtype.itemsize
                      + sum(int(p.size) * p.dtype.itemsize for p in params)
                      + batch * out_dim * x.dtype.itemsize)
    cost = pl.CostEstimate(flops=int(flops), transcendentals=0,
                           bytes_accessed=int(bytes_accessed))

    out_shape = jax.ShapeDtypeStruct((batch, out_dim), x.dtype)

    # Live VMEM per batch row inside the kernel: f32 x, f32 + bf16 hidden,
    # f32 padded fc2 result, f32 stored output.
    per_row_bytes = 4 * in_dim + 6 * hidden + 4 * out_pad + 4 * out_dim
    rows_budget = _VMEM_SINGLE_BLOCK_BUDGET // per_row_bytes
    tb = _pick_batch_tile(batch, rows_budget)

    if tb is None:
        # Small batch (the PPO inference hot path): one un-gridded VMEM block,
        # no pipeline machinery.  With pre-prepped weights and the in-kernel
        # out_dim store, this pallas_call is the only dispatched op.
        # (Callers can also batch several env steps per call to amortize the
        # ~1-2 us launch/custom-call overhead further.)
        vmem = pl.BlockSpec(memory_space=pltpu.MemorySpace.VMEM)
        return pl.pallas_call(
            _mlp_kernel,
            out_shape=out_shape,
            in_specs=[vmem] * 5,
            out_specs=vmem,
            cost_estimate=cost,
        )(x, w1, b1, w2p, b2)

    # Large batch: tile ONLY the batch axis.  cdiv grid handles ragged tails
    # via masked boundary blocks (each output row depends only on its own
    # input row, so garbage in the padded tail region is harmless and masked
    # on writeback).  Weights stay VMEM-resident via constant index_maps; the
    # batch axis is "parallel" so v7x's two TCs can split it (inert elsewhere).
    grid = (pl.cdiv(batch, tb),)
    return pl.pallas_call(
        _mlp_kernel,
        out_shape=out_shape,
        grid=grid,
        in_specs=[
            pl.BlockSpec((tb, in_dim), lambda i: (i, 0)),
            pl.BlockSpec((in_dim, hidden), lambda i: (0, 0)),
            pl.BlockSpec((1, hidden), lambda i: (0, 0)),
            pl.BlockSpec((hidden, out_pad), lambda i: (0, 0)),
            pl.BlockSpec((1, out_dim), lambda i: (0, 0)),
        ],
        out_specs=pl.BlockSpec((tb, out_dim), lambda i: (i, 0)),
        compiler_params=pltpu.CompilerParams(
            dimension_semantics=("parallel",)),
        cost_estimate=cost,
    )(x, w1, b1, w2p, b2)


def init_mlp_params(key, input_dim, hidden_dim, output_dim, dtype=jnp.float32):
    """Deterministic init mirroring PyTorch nn.Linear default
    (uniform(-1/sqrt(fan_in), 1/sqrt(fan_in)))."""
    k1, k2, k3, k4 = jax.random.split(key, 4)
    bound1 = 1.0 / jnp.sqrt(jnp.asarray(input_dim, dtype))
    bound2 = 1.0 / jnp.sqrt(jnp.asarray(hidden_dim, dtype))
    # stored as [in_dim, out_dim] (transposed relative to PyTorch's [out, in])
    w1 = jax.random.uniform(k1, (input_dim, hidden_dim), dtype, -bound1, bound1)
    b1 = jax.random.uniform(k2, (1, hidden_dim), dtype, -bound1, bound1)
    w2 = jax.random.uniform(k3, (hidden_dim, output_dim), dtype, -bound2, bound2)
    b2 = jax.random.uniform(k4, (1, output_dim), dtype, -bound2, bound2)
    return w1, b1, w2, b2


def mlp_reference(x, w1, b1, w2, b2):
    """Pure-JAX reference mirroring the kernel's numerics
    (bf16 MXU operands, f32 accumulation, eval-mode dropout == identity)."""
    h = jnp.dot(x.astype(jnp.bfloat16), w1.astype(jnp.bfloat16),
                preferred_element_type=jnp.float32) + b1
    h = jnp.maximum(h, 0.0)
    return jnp.dot(h.astype(jnp.bfloat16), w2.astype(jnp.bfloat16),
                   preferred_element_type=jnp.float32) + b2


if __name__ == "__main__":
    # CartPole PPO: input_dim=4 (observation), hidden_dim=128, output_dim=2 (actions)
    input_dim, hidden_dim, output_dim = 4, 128, 2
    key = jax.random.PRNGKey(0)
    kx, kp, kx2 = jax.random.split(key, 3)
    w1, b1, w2, b2 = init_mlp_params(kp, input_dim, hidden_dim, output_dim)
    params = prepare_mlp_params(w1, b1, w2, b2)   # one-time prep (pad + bf16)

    # --- small-batch inference path (single VMEM block, no grid) ---
    batch = 8
    x = jax.random.normal(kx, (batch, input_dim), jnp.float32)
    out = mlp_forward(x, params)
    jax.block_until_ready(out)
    ref = mlp_reference(x, w1, b1, w2, b2)
    assert out.shape == (batch, output_dim)
    assert jnp.allclose(out, ref, atol=1e-2, rtol=1e-2)

    # --- large, non-tile-divisible batch (cdiv grid, ragged tail, resident weights) ---
    big_batch = 7000
    xb = jax.random.normal(kx2, (big_batch, input_dim), jnp.float32)
    outb = mlp_forward(xb, params)
    jax.block_until_ready(outb)
    refb = mlp_reference(xb, w1, b1, w2, b2)
    assert outb.shape == (big_batch, output_dim)
    assert jnp.allclose(outb, refb, atol=1e-2, rtol=1e-2)

    print("KERNEL_OK")
</pallas_src>

<mosaic_0001>
module attributes {stable_mosaic.version = 11 : i64} {
  func.func @_mlp_kernel(%arg0: memref<8x4xf32, #tpu.memory_space<vmem>>, %arg1: memref<4x128xbf16, #tpu.memory_space<vmem>>, %arg2: memref<1x128xf32, #tpu.memory_space<vmem>>, %arg3: memref<128x128xbf16, #tpu.memory_space<vmem>>, %arg4: memref<1x2xf32, #tpu.memory_space<vmem>>, %arg5: memref<8x2xf32, #tpu.memory_space<vmem>>) attributes {dimension_semantics = [], scalar_prefetch = 0 : i64, scratch_operands = 0 : i64, tpu.core_type = #tpu.core_type<tc>} {
    %c0 = arith.constant 0 : index
    %c0_0 = arith.constant 0 : index
    %0 = vector.load %arg0[%c0, %c0_0] : memref<8x4xf32, #tpu.memory_space<vmem>>, vector<8x4xf32>
    %1 = arith.truncf %0 : vector<8x4xf32> to vector<8x4xbf16>
    %c0_1 = arith.constant 0 : index
    %c0_2 = arith.constant 0 : index
    %2 = vector.load %arg1[%c0_1, %c0_2] : memref<4x128xbf16, #tpu.memory_space<vmem>>, vector<4x128xbf16>
    %cst = arith.constant dense<0.000000e+00> : vector<8x128xf32>
    %3 = tpu.matmul %1, %2, %cst {dimension_numbers = #tpu.dot_dimension_numbers<[1], [0], [0], [1], [0, 0, 1, 1], [], []>} : vector<8x4xbf16>, vector<4x128xbf16>, vector<8x128xf32> -> vector<8x128xf32>
    %c0_3 = arith.constant 0 : index
    %c0_4 = arith.constant 0 : index
    %4 = vector.load %arg2[%c0_3, %c0_4] : memref<1x128xf32, #tpu.memory_space<vmem>>, vector<1x128xf32>
    %5 = vector.broadcast %4 : vector<1x128xf32> to vector<8x128xf32>
    %6 = arith.addf %3, %5 : vector<8x128xf32>
    %cst_5 = arith.constant 0.000000e+00 : f32
    %7 = vector.broadcast %cst_5 : f32 to vector<8x128xf32>
    %8 = arith.maximumf %6, %7 : vector<8x128xf32>
    %9 = arith.truncf %8 : vector<8x128xf32> to vector<8x128xbf16>
    %c0_6 = arith.constant 0 : index
    %c0_7 = arith.constant 0 : index
    %10 = vector.load %arg3[%c0_6, %c0_7] : memref<128x128xbf16, #tpu.memory_space<vmem>>, vector<128x128xbf16>
    %cst_8 = arith.constant dense<0.000000e+00> : vector<8x128xf32>
    %11 = tpu.matmul %9, %10, %cst_8 {dimension_numbers = #tpu.dot_dimension_numbers<[1], [0], [0], [1], [0, 0, 1, 1], [], []>} : vector<8x128xbf16>, vector<128x128xbf16>, vector<8x128xf32> -> vector<8x128xf32>
    %12 = vector.extract_strided_slice %11 {offsets = [0, 0], sizes = [8, 2], strides = [1, 1]} : vector<8x128xf32> to vector<8x2xf32>
    %c0_9 = arith.constant 0 : index
    %c0_10 = arith.constant 0 : index
    %13 = vector.load %arg4[%c0_9, %c0_10] : memref<1x2xf32, #tpu.memory_space<vmem>>, vector<1x2xf32>
    %14 = vector.broadcast %13 : vector<1x2xf32> to vector<8x2xf32>
    %15 = arith.addf %12, %14 : vector<8x2xf32>
    %c0_11 = arith.constant 0 : index
    %c0_12 = arith.constant 0 : index
    %16 = vector.load %arg5[%c0_11, %c0_12] : memref<8x2xf32, #tpu.memory_space<vmem>>, vector<8x2xf32>
    tpu.vector_store %arg5[%c0_11, %c0_12], %15 {strides = array<i32>} : memref<8x2xf32, #tpu.memory_space<vmem>>, vector<8x2xf32>,
    return
  }
}

</mosaic_0001>

<llo_original>
// kernel: tpu_custom_call.1
$region0: #{tpu_custom_call.1}
  #allocation0 [shape = 'u32[]', space=smem, size = 0x4, offset = 0x4, fixed_abs, tag = 'smem constant byte address 0x4 - core index']
  #allocation1 [shape = 'u32[144,128]{1,0:T(1,128)}', space=vmem, size = 0x12000, scoped, tag = 'internal scratch']
  %s0 = inlined_call_operand.vmem [shape: f32[8,4], index: 0, kind: input, shape index: {}]
  %s1 = inlined_call_operand.vmem [shape: bf16[4,128], index: 1, kind: input, shape index: {}]
  %s2 = inlined_call_operand.vmem [shape: f32[1,128], index: 2, kind: input, shape index: {}]
  %s3 = inlined_call_operand.hbm [shape: bf16[128,128], index: 3, kind: input, shape index: {}]
  %s4 = inlined_call_operand.vmem [shape: f32[1,2], index: 4, kind: input, shape index: {}]
  %s5 = inlined_call_operand.vmem [shape: f32[8,2], index: 5, kind: output, shape index: {}]
  %s6 = sld [smem:[#allocation0]]
  $region34: #{tpu_custom_call.1} parent=0
    _
  %s8 = ssub.s32 1, %s6
  %s9 = scalar_select 0, %s8, %s6
  $region1: #{tpu_custom_call.1} parent=0
    #allocation2 [shape = 'u8[32768]{0}', space=vmem, size = 0x8000, scoped, tag = 'input window, operand 3, single buffered']
    #allocation3 [shape = 's32[1]{0}', space=sflag, size = 0x4, scoped, tag = 'scoped memory for tpu_custom_call.1']
    %10 = vsyncpa [#allocation3], 0
    // Predicated region
    $region2: #{tpu_custom_call.1} parent=1 // pred_check
      _
    $region3: #{tpu_custom_call.1} parent=1 // pred_check_branch
      %12 = sbr.rel (0) target = $region5
    $region4: #{tpu_custom_call.1} parent=1 // pred_region
      _
    $region5: #{tpu_custom_call.1} parent=1 // pred_fallthru
      _
    // Predicated region
    $region6: #{tpu_custom_call.1} parent=1 // pred_check
      _
    $region7: #{tpu_custom_call.1} parent=1 // pred_check_branch
      %14 = sbr.rel (0) target = $region9
    $region8: #{tpu_custom_call.1} parent=1 // pred_region
      _
    $region9: #{tpu_custom_call.1} parent=1 // pred_fallthru
      _
    // Predicated region
    $region10: #{tpu_custom_call.1} parent=1 // pred_check
      _
    $region11: #{tpu_custom_call.1} parent=1 // pred_check_branch
      %16 = sbr.rel (0) target = $region13
    $region12: #{tpu_custom_call.1} parent=1 // pred_region
      _
    $region13: #{tpu_custom_call.1} parent=1 // pred_fallthru
      _
    // Predicated region
    $region14: #{tpu_custom_call.1} parent=1 // pred_check
      _
    $region15: #{tpu_custom_call.1} parent=1 // pred_check_branch
      %18 = sbr.rel (0) target = $region17
    $region16: #{tpu_custom_call.1} parent=1 // pred_region
      %s20 = ssub.s32 1024, 1024
      %21 = vsyncadd [#allocation3], %s20
      %s22 = sshll.u32 [#allocation2], 4
      %s23 = int_to_ptr.vmem [resolvable:$true] %s22
      %28 = dma.hbm_to_vmem [thread:$0]  %s3, 1024, %s23, [#allocation3], 64, 64, 4
    $region17: #{tpu_custom_call.1} parent=1 // pred_fallthru
      _
    // Predicated region
    $region18: #{tpu_custom_call.1} parent=1 // pred_check
      _
    $region19: #{tpu_custom_call.1} parent=1 // pred_check_branch
      %30 = sbr.rel (0) target = $region21
    $region20: #{tpu_custom_call.1} parent=1 // pred_region
      _
    $region21: #{tpu_custom_call.1} parent=1 // pred_fallthru
      _
    // Predicated region
    $region22: #{tpu_custom_call.1} parent=1 // pred_check
      _
    $region23: #{tpu_custom_call.1} parent=1 // pred_check_branch
      %32 = sbr.rel (0) target = $region25
    $region24: #{tpu_custom_call.1} parent=1 // pred_region
      %33 = dma.done [#allocation3], 1024
    $region25: #{tpu_custom_call.1} parent=1 // pred_fallthru
      _
    %v35 = vld [vmem:[%s0] sm:$0xff]
    %v36 = vpack.c.bf16 %v35, %v35
    %v37 = vld [vmem:[%s1] sm:$0x3]
    %v38 = vld [vmem:[%s2] sm:$0x1]
    %v40 = vlaneseq
    %v41 = vshrl.u32 %v40, 7
    %v42 = vsub.s32 0, %v41
    %v43 = vrot.slane %v38, %v42
    %vm45 = vcmask 31744
    %v47 = vsel %vm45, %v36, 0
    %vm49 = vcmask 1041408
    %v51 = vsel %vm49, %v37, 0
    %53 = vmatprep.subr.bf16.mxu0 0
    %54 = vmatpush1.bf16.msra.mxu0 0
    %55 = vmatprep.subr.bf16.mxu0 0
    %56 = vmatpush1.bf16.msra.mxu0 0
    %57 = vmatprep.subr.bf16.mxu0 0
    %58 = vmatpush1.bf16.msra.mxu0 0
    %59 = vmatprep.subr.bf16.mxu0 0
    %60 = vmatpush1.bf16.msra.mxu0 0
    %61 = vmatprep.subr.bf16.mxu0 0
    %62 = vmatpush1.bf16.msra.mxu0 0
    %63 = vmatprep.subr.bf16.mxu0 0
    %64 = vmatpush1.bf16.msra.mxu0 0
    %65 = vmatprep.subr.bf16.mxu0 0
    %66 = vmatpush1.bf16.msra.mxu0 0
    %67 = vmatprep.subr.bf16.mxu0 0
    %68 = vmatpush1.bf16.msra.mxu0 %v51
    %69 = vmatprep.subr.bf16.mxu0 0
    %70 = vmatpush2.bf16.msra.mxu0 0
    %71 = vmatprep.subr.bf16.mxu0 0
    %72 = vmatpush2.bf16.msra.mxu0 0
    %73 = vmatprep.subr.bf16.mxu0 0
    %74 = vmatpush2.bf16.msra.mxu0 0
    %75 = vmatprep.subr.bf16.mxu0 0
    %76 = vmatpush2.bf16.msra.mxu0 0
    %77 = vmatprep.subr.bf16.mxu0 0
    %78 = vmatpush2.bf16.msra.mxu0 0
    %79 = vmatprep.subr.bf16.mxu0 0
    %80 = vmatpush2.bf16.msra.mxu0 0
    %81 = vmatprep.subr.bf16.mxu0 0
    %82 = vmatpush2.bf16.msra.mxu0 0
    %83 = vmatprep.subr.bf16.mxu0 0
    %84 = vmatpush2.bf16.msra.mxu0 0
    %85 = vmatprep.mubr.bf16.mxu0 0
    %86 = vmatmul.mubr.bf16.gmra.mxu0 %v47
    %v87 = vpop.f32.mrf.mxu0
    %v88 = vadd.f32 %v43, %v87
    %v89 = vpop.f32.mrf.mxu0
    %v90 = vpop.f32.mrf.mxu0
    %v91 = vpop.f32.mrf.mxu0
    %92 = vdwg.mxu0
    %v93 = vmax.f32 %v88, 0.0
    %v94 = vpack.c.bf16 %v93, %v93
    %v95 = vld [vmem:[#allocation2] sm:$0xf]
    %v96 = vld [vmem:[#allocation2 + $0x4] sm:$0xf]
    %v97 = vld [vmem:[#allocation2 + $0x8] sm:$0xf]
    %v98 = vld [vmem:[#allocation2 + $0xc] sm:$0xf]
    %v99 = vld [vmem:[#allocation2 + $0x10] sm:$0xf]
    %v100 = vld [vmem:[#allocation2 + $0x14] sm:$0xf]
    %v101 = vld [vmem:[#allocation2 + $0x18] sm:$0xf]
    %v102 = vld [vmem:[#allocation2 + $0x1c] sm:$0xf]
    %v103 = vld [vmem:[#allocation2 + $0x20] sm:$0xf]
    %v104 = vld [vmem:[#allocation2 + $0x24] sm:$0xf]
    %v105 = vld [vmem:[#allocation2 + $0x28] sm:$0xf]
    %v106 = vld [vmem:[#allocation2 + $0x2c] sm:$0xf]
    %v107 = vld [vmem:[#allocation2 + $0x30] sm:$0xf]
    %v108 = vld [vmem:[#allocation2 + $0x34] sm:$0xf]
    %v109 = vld [vmem:[#allocation2 + $0x38] sm:$0xf]
    %v110 = vld [vmem:[#allocation2 + $0x3c] sm:$0xf]
    %v127 = vunpack.c.l.b16 %v95
    %v128 = vunpack.c.l.b16 %v96
    %v129 = vunpack.c.l.b16 %v97
    %v130 = vunpack.c.l.b16 %v98
    %v131 = vunpack.c.l.b16 %v99
    %v132 = vunpack.c.l.b16 %v100
    %v133 = vunpack.c.l.b16 %v101
    %v134 = vunpack.c.l.b16 %v102
    %v135 = vunpack.c.l.b16 %v103
    %v136 = vunpack.c.l.b16 %v104
    %v137 = vunpack.c.l.b16 %v105
    %v138 = vunpack.c.l.b16 %v106
    %v139 = vunpack.c.l.b16 %v107
    %v140 = vunpack.c.l.b16 %v108
    %v141 = vunpack.c.l.b16 %v109
    %v142 = vunpack.c.l.b16 %v110
    %v143 = vpack.c.b16 %v128, %v127
    %v144 = vpack.c.b16 %v130, %v129
    %v145 = vpack.c.b16 %v132, %v131
    %v146 = vpack.c.b16 %v134, %v133
    %v147 = vpack.c.b16 %v136, %v135
    %v148 = vpack.c.b16 %v138, %v137
    %v149 = vpack.c.b16 %v140, %v139
    %v150 = vpack.c.b16 %v142, %v141
    %159 = vmatprep.subr.bf16.mxu0 0
    %160 = vmatpush1.bf16.msra.mxu0 %v150
    %161 = vmatprep.subr.bf16.mxu0 0
    %162 = vmatpush1.bf16.msra.mxu0 %v149
    %163 = vmatprep.subr.bf16.mxu0 0
    %164 = vmatpush1.bf16.msra.mxu0 %v148
    %165 = vmatprep.subr.bf16.mxu0 0
    %166 = vmatpush1.bf16.msra.mxu0 %v147
    %167 = vmatprep.subr.bf16.mxu0 0
    %168 = vmatpush1.bf16.msra.mxu0 %v146
    %169 = vmatprep.subr.bf16.mxu0 0
    %170 = vmatpush1.bf16.msra.mxu0 %v145
    %171 = vmatprep.subr.bf16.mxu0 0
    %172 = vmatpush1.bf16.msra.mxu0 %v144
    %173 = vmatprep.subr.bf16.mxu0 0
    %174 = vmatpush1.bf16.msra.mxu0 %v143
    %175 = vmatprep.subr.bf16.mxu0 0
    %176 = vmatpush2.bf16.msra.mxu0 0
    %177 = vmatprep.subr.bf16.mxu0 0
    %178 = vmatpush2.bf16.msra.mxu0 0
    %179 = vmatprep.subr.bf16.mxu0 0
    %180 = vmatpush2.bf16.msra.mxu0 0
    %181 = vmatprep.subr.bf16.mxu0 0
    %182 = vmatpush2.bf16.msra.mxu0 0
    %183 = vmatprep.subr.bf16.mxu0 0
    %184 = vmatpush2.bf16.msra.mxu0 0
    %185 = vmatprep.subr.bf16.mxu0 0
    %186 = vmatpush2.bf16.msra.mxu0 0
    %187 = vmatprep.subr.bf16.mxu0 0
    %188 = vmatpush2.bf16.msra.mxu0 0
    %189 = vmatprep.subr.bf16.mxu0 0
    %190 = vmatpush2.bf16.msra.mxu0 0
    %191 = vmatprep.mubr.bf16.mxu0 0
    %192 = vmatmul.mubr.bf16.gmra.mxu0 %v94
    %v193 = vpop.f32.mrf.mxu0
    %v194 = vadd.f32 0.0, %v193
    %v195 = vpop.f32.mrf.mxu0
    %v196 = vpop.f32.mrf.mxu0
    %v197 = vpop.f32.mrf.mxu0
    %198 = vdwg.mxu0
    %v199 = vld [vmem:[%s4] sm:$0x1]
    %v201 = vlaneseq
    %v202 = vshrl.u32 %v201, 7
    %v203 = vsub.s32 0, %v202
    %v204 = vrot.slane %v199, %v203
    %v206 = vadd.f32 %v194, %v204
    %vm207 = vcmask 15360
    %208 = vst.msk [vmem:[%s5] sm:$0xff] %vm207, %v206
    // Predicated region
    $region26: #{tpu_custom_call.1} parent=1 // pred_check
      _
    $region27: #{tpu_custom_call.1} parent=1 // pred_check_branch
      %210 = sbr.rel (0) target = $region29
    $region28: #{tpu_custom_call.1} parent=1 // pred_region
      _
    $region29: #{tpu_custom_call.1} parent=1 // pred_fallthru
      _
    // Predicated region
    $region30: #{tpu_custom_call.1} parent=1 // pred_check
      _
    $region31: #{tpu_custom_call.1} parent=1 // pred_check_branch
      %212 = sbr.rel (0) target = $region33
    $region32: #{tpu_custom_call.1} parent=1 // pred_region
      _
    $region33: #{tpu_custom_call.1} parent=1 // pred_fallthru
      _
    %213 = vsyncpa [#allocation3], 1

</llo_original>
